<compile_context>
chip_gen: v7x
topology: tpu7x:2x2x1
jax: 0.10.0
libtpu: 0.0.40
codegen_flags: <defaults>
</compile_context>

<pallas_src>
import functools
import math

import jax
import jax.numpy as jnp
from jax.experimental import pallas as pl
from jax.experimental.pallas import tpu as pltpu


def _round_up(x, m):
    return ((x + m - 1) // m) * m


def _choose_tile_n(n, c):
    # Keep one (C, TILE_N) f32 plane around ~2 MiB so that the ~8 live f32
    # intermediates plus the double-buffered input stay well inside the
    # scoped VMEM limit on every chip (v7x has only 64 MiB physical VMEM).
    budget = 2 * 1024 * 1024
    t = budget // max(1, c * 4)
    t = max(128, min(4096, (t // 128) * 128))
    return min(t, _round_up(n, 128))


def _ldr_loss_kernel(yp_ref, yt_ref, part_ref, *, threshold, lam, n_valid):
    # yp_ref:   (C, TILE_N) logits (native dtype) — classes on sublanes,
    #           samples on the 128-lane axis.
    # yt_ref:   (1, TILE_N) int32 class labels.
    # part_ref: (1, 1, 1) f32 per-tile partial sum of per-sample losses.
    yp = yp_ref[...].astype(jnp.float32)          # (C, T)
    yt = yt_ref[...]                              # (1, T)
    c, t = yp.shape

    # one-hot(y_true) as a (C, T) mask: onehot[k, j] = (k == y_true[j])
    class_ids = jax.lax.broadcasted_iota(jnp.int32, (c, t), 0)
    onehot = class_ids == yt                      # bool (C, T)

    # softplus + per-sample mean normalization (mean over classes = sublanes)
    sp = jax.nn.softplus(yp)                                          # (C, T)
    denorm = jnp.sum(sp, axis=0, keepdims=True) * (1.0 / c)           # (1, T)
    yp_norm = sp * pl.reciprocal(denorm, approx=False)                # (C, T)

    true_logits = jnp.sum(
        yp_norm * onehot.astype(jnp.float32), axis=0, keepdims=True)  # (1, T)

    # threshold * (1 - onehot) == where(onehot, 0, threshold)  (no broadcast mul)
    diff = jnp.where(onehot, 0.0, threshold) + (yp_norm - true_logits)
    if lam != 1.0:
        diff = diff * (1.0 / lam)                 # constant folded in Python

    # stabilized log-mean-exp over classes; log(mean) = log(sum) - log(C)
    max_diff = jnp.max(diff, axis=0, keepdims=True)                   # (1, T)
    e = jnp.exp(diff - max_diff)                                      # (C, T)
    row_loss = jnp.log(jnp.sum(e, axis=0, keepdims=True)) - math.log(c) + max_diff
    if lam != 1.0:
        row_loss = row_loss * lam

    # mask out padded samples (columns beyond the true batch size)
    col = pl.program_id(0) * t + jax.lax.broadcasted_iota(jnp.int32, (1, t), 1)
    row_loss = jnp.where(col < n_valid, row_loss, 0.0)

    part_ref[...] = jnp.sum(row_loss).reshape(1, 1, 1)


def ldr_loss_v1(y_pred, y_true, threshold=2.0, Lambda=1.0):
    """Pallas implementation of LDRLoss_V1.forward.

    y_pred: (N, C) float logits (any float dtype; cast to f32 inside the kernel)
    y_true: (N,) integer class labels
    returns: scalar f32 loss (mean over the batch)
    """
    n, c = y_pred.shape

    tile_n = _choose_tile_n(n, c)
    n_pad = _round_up(n, tile_n)
    num_tiles = n_pad // tile_n

    # Lane-dense layout: samples on the lane axis. Keep the native dtype
    # (no wrapper-side f32 materialization); the kernel casts tiles to f32.
    yp_t = jnp.transpose(y_pred)                                  # (C, N)
    yp_t = jnp.pad(yp_t, ((0, 0), (0, n_pad - n)))                # (C, N_pad)
    yt = jnp.pad(y_true.astype(jnp.int32), (0, n_pad - n)).reshape(1, n_pad)

    kernel = functools.partial(
        _ldr_loss_kernel,
        threshold=float(threshold),
        lam=float(Lambda),
        n_valid=n,
    )

    itemsize = jnp.dtype(y_pred.dtype).itemsize
    cost = pl.CostEstimate(
        flops=10 * n_pad * c,
        transcendentals=4 * n_pad * c,          # softplus(exp+log), exp, log
        bytes_accessed=n_pad * c * itemsize + n_pad * 4 + num_tiles * 4,
    )

    partials = pl.pallas_call(
        kernel,
        out_shape=jax.ShapeDtypeStruct((num_tiles, 1, 1), jnp.float32),
        grid=(num_tiles,),
        in_specs=[
            pl.BlockSpec((c, tile_n), lambda i: (0, i)),   # logits tile
            pl.BlockSpec((1, tile_n), lambda i: (0, i)),   # labels tile
        ],
        out_specs=pl.BlockSpec((1, 1, 1), lambda i: (i, 0, 0)),
        compiler_params=pltpu.CompilerParams(
            dimension_semantics=("parallel",),             # independent tiles
            vmem_limit_bytes=32 * 1024 * 1024,
        ),
        cost_estimate=cost,
    )(yp_t, yt)

    return jnp.sum(partials) / n


def _reference_loss(y_pred, y_true, threshold=2.0, Lambda=1.0):
    # Pure-JAX reference mirroring the PyTorch module, for a sanity check.
    n, c = y_pred.shape
    onehot = jax.nn.one_hot(y_true, c, dtype=jnp.float32)
    sp = jax.nn.softplus(y_pred.astype(jnp.float32))
    sp = sp / jnp.mean(sp, axis=1, keepdims=True)
    true_logits = jnp.sum(sp * onehot, axis=1, keepdims=True)
    diff = (threshold * (1.0 - onehot) + (sp - true_logits)) / Lambda
    max_diff = jnp.max(diff, axis=1, keepdims=True)
    e = jnp.exp(diff - max_diff)
    loss = Lambda * (jnp.log(jnp.mean(e, axis=1, keepdims=True)) + max_diff)
    return jnp.mean(loss)


if __name__ == "__main__":
    num_classes = 4
    batch = 8

    key = jax.random.PRNGKey(0)
    k_pred, k_true = jax.random.split(key)
    y_pred = jax.random.normal(k_pred, (batch, num_classes), dtype=jnp.float32)
    y_true = jax.random.randint(k_true, (batch,), 0, num_classes, dtype=jnp.int32)

    loss = jax.block_until_ready(ldr_loss_v1(y_pred, y_true, threshold=2.0, Lambda=1.0))
    ref = jax.block_until_ready(_reference_loss(y_pred, y_true, 2.0, 1.0))
    assert jnp.allclose(loss, ref, atol=1e-5, rtol=1e-5), (loss, ref)

    print("KERNEL_OK")
</pallas_src>

<mosaic_0001>
module attributes {stable_mosaic.version = 11 : i64} {
  func.func @_ldr_loss_kernel(%arg0: i32, %arg1: memref<4x128xf32, #tpu.memory_space<vmem>>, %arg2: memref<1x128xi32, #tpu.memory_space<vmem>>, %arg3: memref<1x1x1xf32, #tpu.memory_space<vmem>>) attributes {dimension_semantics = [#tpu.dimension_semantics<parallel>], iteration_bounds = array<i64: 1>, scalar_prefetch = 0 : i64, scratch_operands = 0 : i64, tpu.core_type = #tpu.core_type<tc>, window_params = [{transform_indices = @transform_0, window_bounds = array<i64: 4, 128>}, {transform_indices = @transform_1, window_bounds = array<i64: 1, 128>}, {transform_indices = @transform_2, window_bounds = array<i64: 1, 1, 1>}]} {
    %c0 = arith.constant 0 : index
    %c0_0 = arith.constant 0 : index
    %0 = vector.load %arg1[%c0, %c0_0] : memref<4x128xf32, #tpu.memory_space<vmem>>, vector<4x128xf32>
    %c0_1 = arith.constant 0 : index
    %c0_2 = arith.constant 0 : index
    %1 = vector.load %arg2[%c0_1, %c0_2] : memref<1x128xi32, #tpu.memory_space<vmem>>, vector<1x128xi32>
    %2 = tpu.iota {dimensions = array<i32: 0>} : vector<4x128xi32>
    %3 = vector.broadcast %1 : vector<1x128xi32> to vector<4x128xi32>
    %4 = arith.cmpi eq, %2, %3 : vector<4x128xi32>
    %cst = arith.constant 0.000000e+00 : f32
    %5 = vector.broadcast %cst : f32 to vector<4x128xf32>
    %6 = arith.maximumf %0, %5 : vector<4x128xf32>
    %7 = vector.broadcast %cst : f32 to vector<4x128xf32>
    %8 = arith.subf %0, %7 : vector<4x128xf32>
    %9 = arith.cmpf one, %8, %8 : vector<4x128xf32>
    %10 = vector.broadcast %cst : f32 to vector<4x128xf32>
    %11 = arith.addf %0, %10 : vector<4x128xf32>
    %12 = math.absf %8 : vector<4x128xf32>
    %cst_3 = arith.constant 0.000000e+00 : f32
    %13 = vector.broadcast %cst_3 : f32 to vector<4x128xf32>
    %14 = arith.subf %13, %12 : vector<4x128xf32>
    %15 = math.exp %14 : vector<4x128xf32>
    %16 = math.log1p %15 : vector<4x128xf32>
    %17 = arith.addf %6, %16 : vector<4x128xf32>
    %18 = arith.select %9, %11, %17 : vector<4x128xi1>, vector<4x128xf32>
    %cst_4 = arith.constant dense<0.000000e+00> : vector<128xf32>
    %19 = vector.multi_reduction <add>, %18, %cst_4 [0] : vector<4x128xf32> to vector<128xf32>
    %20 = vector.shape_cast %19 : vector<128xf32> to vector<1x128xf32>
    %cst_5 = arith.constant 2.500000e-01 : f32
    %21 = vector.broadcast %cst_5 : f32 to vector<1x128xf32>
    %22 = arith.mulf %20, %21 : vector<1x128xf32>
    %23 = tpu.reciprocal %22 : vector<1x128xf32> -> vector<1x128xf32>
    %24 = vector.broadcast %23 : vector<1x128xf32> to vector<4x128xf32>
    %25 = arith.mulf %18, %24 : vector<4x128xf32>
    %26 = arith.extui %4 : vector<4x128xi1> to vector<4x128xi32>
    %27 = arith.sitofp %26 : vector<4x128xi32> to vector<4x128xf32>
    %28 = arith.mulf %25, %27 : vector<4x128xf32>
    %cst_6 = arith.constant dense<0.000000e+00> : vector<128xf32>
    %29 = vector.multi_reduction <add>, %28, %cst_6 [0] : vector<4x128xf32> to vector<128xf32>
    %30 = vector.shape_cast %29 : vector<128xf32> to vector<1x128xf32>
    %cst_7 = arith.constant 0.000000e+00 : f32
    %cst_8 = arith.constant 2.000000e+00 : f32
    %31 = vector.broadcast %cst_7 : f32 to vector<4x128xf32>
    %32 = vector.broadcast %cst_8 : f32 to vector<4x128xf32>
    %33 = arith.select %4, %31, %32 : vector<4x128xi1>, vector<4x128xf32>
    %34 = vector.broadcast %30 : vector<1x128xf32> to vector<4x128xf32>
    %35 = arith.subf %25, %34 : vector<4x128xf32>
    %36 = arith.addf %33, %35 : vector<4x128xf32>
    %cst_9 = arith.constant dense<0xFF800000> : vector<128xf32>
    %37 = vector.multi_reduction <maximumf>, %36, %cst_9 [0] : vector<4x128xf32> to vector<128xf32>
    %38 = vector.shape_cast %37 : vector<128xf32> to vector<1x128xf32>
    %39 = vector.broadcast %38 : vector<1x128xf32> to vector<4x128xf32>
    %40 = arith.subf %36, %39 : vector<4x128xf32>
    %41 = math.exp %40 : vector<4x128xf32>
    %cst_10 = arith.constant dense<0.000000e+00> : vector<128xf32>
    %42 = vector.multi_reduction <add>, %41, %cst_10 [0] : vector<4x128xf32> to vector<128xf32>
    %43 = vector.shape_cast %42 : vector<128xf32> to vector<1x128xf32>
    %44 = math.log %43 : vector<1x128xf32>
    %cst_11 = arith.constant 1.38629436 : f32
    %45 = vector.broadcast %cst_11 : f32 to vector<1x128xf32>
    %46 = arith.subf %44, %45 : vector<1x128xf32>
    %47 = arith.addf %46, %38 : vector<1x128xf32>
    %c128_i32 = arith.constant 128 : i32
    %48 = arith.muli %arg0, %c128_i32 : i32
    %49 = tpu.iota {dimensions = array<i32: 1>} : vector<1x128xi32>
    %50 = vector.broadcast %48 : i32 to vector<1x128xi32>
    %51 = arith.addi %50, %49 : vector<1x128xi32>
    %c8_i32 = arith.constant 8 : i32
    %52 = vector.broadcast %c8_i32 : i32 to vector<1x128xi32>
    %53 = arith.cmpi slt, %51, %52 : vector<1x128xi32>
    %cst_12 = arith.constant 0.000000e+00 : f32
    %54 = vector.broadcast %cst_12 : f32 to vector<1x128xf32>
    %55 = arith.select %53, %47, %54 : vector<1x128xi1>, vector<1x128xf32>
    %56 = vector.shape_cast %55 : vector<1x128xf32> to vector<1x1x128xf32>
    %cst_13 = arith.constant dense<0.000000e+00> : vector<1xf32>
    %57 = vector.multi_reduction <add>, %56, %cst_13 [1, 2] : vector<1x1x128xf32> to vector<1xf32>
    %58 = vector.shape_cast %57 : vector<1xf32> to vector<1x1x1xf32>
    %59 = vector.extract %58[0, 0, 0] : f32 from vector<1x1x1xf32>
    %60 = vector.broadcast %59 : f32 to vector<1x1x1xf32>
    %c0_14 = arith.constant 0 : index
    %c0_15 = arith.constant 0 : index
    %c0_16 = arith.constant 0 : index
    %61 = vector.load %arg3[%c0_14, %c0_15, %c0_16] : memref<1x1x1xf32, #tpu.memory_space<vmem>>, vector<1x1x1xf32>
    tpu.vector_store %arg3[%c0_14, %c0_15, %c0_16], %60 {strides = array<i32>} : memref<1x1x1xf32, #tpu.memory_space<vmem>>, vector<1x1x1xf32>,
    return
  }
  func.func @transform_0(%arg0: i32) -> (i32, i32) {
    %c0_i32 = arith.constant 0 : i32
    %c0_i32_0 = arith.constant 0 : i32
    return %c0_i32, %arg0 : i32, i32
  }
  func.func @transform_1(%arg0: i32) -> (i32, i32) {
    %c0_i32 = arith.constant 0 : i32
    %c0_i32_0 = arith.constant 0 : i32
    return %c0_i32, %arg0 : i32, i32
  }
  func.func @transform_2(%arg0: i32) -> (i32, i32, i32) {
    %c0_i32 = arith.constant 0 : i32
    %c0_i32_0 = arith.constant 0 : i32
    %c0_i32_1 = arith.constant 0 : i32
    return %arg0, %c0_i32, %c0_i32_0 : i32, i32, i32
  }
}

</mosaic_0001>

<llo_original>
// kernel: tpu_custom_call.1
$region0: #{tpu_custom_call.1}
  #allocation0 [shape = 'u32[]', space=smem, size = 0x4, offset = 0x4, fixed_abs, tag = 'smem constant byte address 0x4 - core index']
  #allocation1 [shape = 'u32[144,128]{1,0:T(1,128)}', space=vmem, size = 0x12000, scoped, tag = 'internal scratch']
  %s0 = inlined_call_operand.hbm [shape: f32[4,128], index: 0, kind: input, shape index: {}]
  %s1 = inlined_call_operand.vmem [shape: s32[1,128], index: 1, kind: input, shape index: {}]
  %s2 = inlined_call_operand.hbm [shape: f32[1,1,1], index: 2, kind: output, shape index: {}]
  %s3 = sld [smem:[#allocation0]]
  $region22: #{tpu_custom_call.1} parent=0
    _
  %s5 = ssub.s32 1, %s3
  %s6 = scalar_select 0, %s5, %s3
  $region1: #{tpu_custom_call.1} parent=0
    #allocation2 [shape = 'u8[2048]{0}', space=vmem, size = 0x800, scoped, tag = 'input window, operand 0, single buffered']
    #allocation3 [shape = 's32[1]{0}', space=sflag, size = 0x4, scoped, tag = 'scoped memory for tpu_custom_call.1']
    #allocation4 [shape = 's32[1]{0}', space=sflag, size = 0x4, scoped, tag = 'scoped memory for tpu_custom_call.1']
    #allocation5 [shape = 'u8[512]{0}', space=vmem, size = 0x400, scoped, tag = 'output window, operand 0, single buffered']
    %7 = vsyncpa [#allocation3], 0
    %8 = vsyncpa [#allocation4], 0
    // Predicated region
    $region2: #{tpu_custom_call.1} parent=1 // pred_check
      _
    $region3: #{tpu_custom_call.1} parent=1 // pred_check_branch
      %10 = sbr.rel (0) target = $region5
    $region4: #{tpu_custom_call.1} parent=1 // pred_region
      %s12 = ssub.s32 64, 64
      %13 = vsyncadd [#allocation3], %s12
      %s15 = sshll.u32 [#allocation2], 4
      %s16 = int_to_ptr.vmem [resolvable:$true] %s15
      %18 = dma.hbm_to_vmem [thread:$0]  %s0, 64, %s16, [#allocation3]
    $region5: #{tpu_custom_call.1} parent=1 // pred_fallthru
      _
    // Predicated region
    $region6: #{tpu_custom_call.1} parent=1 // pred_check
      _
    $region7: #{tpu_custom_call.1} parent=1 // pred_check_branch
      %20 = sbr.rel (0) target = $region9
    $region8: #{tpu_custom_call.1} parent=1 // pred_region
      _
    $region9: #{tpu_custom_call.1} parent=1 // pred_fallthru
      _
    // Predicated region
    $region10: #{tpu_custom_call.1} parent=1 // pred_check
      _
    $region11: #{tpu_custom_call.1} parent=1 // pred_check_branch
      %22 = sbr.rel (0) target = $region13
    $region12: #{tpu_custom_call.1} parent=1 // pred_region
      %23 = dma.done [#allocation3], 64
    $region13: #{tpu_custom_call.1} parent=1 // pred_fallthru
      _
    %v24 = vld [vmem:[#allocation2] sm:$0xf]
    %v25 = vld [vmem:[%s1] sm:$0x1]
    %v26 = vlaneseq
    %v27 = vshrl.u32 %v26, 7
    %v28 = vlaneseq
    %v29 = vshrl.u32 %v28, 7
    %v30 = vsub.s32 0, %v29
    %v31 = vrot.slane %v25, %v30
    %vm32 = vcmp.eq.s32.totalorder %v27, %v31
    %v33 = vmax.f32 %v24, 0.0
    %vm34 = vcmp.ne.f32.partialorder %v24, %v24
    %v35 = vadd.f32 %v24, 0.0
    %v36 = vand.u32 2147483647, %v24
    %v37 = vsub.f32 0.0, %v36
    %v38 = vmul.f32 %v37, 1.442695
    %v39 = vpow.pop %v38
    %v40 = vadd.f32 %v39, 1.0
    %v41 = vlog2.pop %v40
    %v42 = vmul.f32 %v41, 0.6931472
    %v43 = vmul.f32 -0.5, %v39
    %v44 = vadd.f32 %v43, 1.0
    %v45 = vmul.f32 %v44, %v39
    %v46 = vand.u32 2147483647, %v39
    %vm47 = vcmp.lt.f32.partialorder %v46, 0.0004427343
    %v48 = vsel %vm47, %v45, %v42
    %v49 = vadd.f32 %v33, %v48
    %v50 = vsel %vm34, %v35, %v49
    %vm51 = vcmask 1043456
    %v52 = vsel %vm51, %v50, 0.0
    %v53 = vrot.slane %v52, 4
    %v54 = vadd.f32 %v52, %v53
    %v55 = vrot.slane %v54, 2
    %v56 = vadd.f32 %v54, %v55
    %v57 = vrot.slane %v56, 1
    %v58 = vadd.f32 %v56, %v57
    %v59 = vmul.f32 %v58, 0.25
    %v60 = vrcp.pop %v59
    %v61 = vmul.f32 %v50, %v60
    %v62 = vsel %vm32, 1, 0
    %v63 = vcvt.s32.f32 %v62
    %v64 = vmul.f32 %v61, %v63
    %v65 = vsel %vm51, %v64, 0.0
    %v66 = vrot.slane %v65, 4
    %v67 = vadd.f32 %v65, %v66
    %v68 = vrot.slane %v67, 2
    %v69 = vadd.f32 %v67, %v68
    %v70 = vrot.slane %v69, 1
    %v71 = vadd.f32 %v69, %v70
    %v72 = vsel %vm32, 0.0, 2.0
    %v73 = vsub.f32 %v61, %v71
    %v74 = vadd.f32 %v72, %v73
    %v75 = vsel %vm51, %v74, -inf
    %v76 = vrot.slane %v75, 4
    %v77 = vmax.f32 %v75, %v76
    %v78 = vrot.slane %v77, 2
    %v79 = vmax.f32 %v77, %v78
    %v80 = vrot.slane %v79, 1
    %v81 = vmax.f32 %v79, %v80
    %v82 = vsub.f32 %v74, %v81
    %v83 = vmul.f32 %v82, 1.442695
    %v84 = vpow.pop %v83
    %v85 = vsel %vm51, %v84, 0.0
    %v86 = vrot.slane %v85, 4
    %v87 = vadd.f32 %v85, %v86
    %v88 = vrot.slane %v87, 2
    %v89 = vadd.f32 %v87, %v88
    %v90 = vrot.slane %v89, 1
    %v91 = vadd.f32 %v89, %v90
    %v92 = vlog2.pop %v91
    %v93 = vmul.f32 %v92, 0.6931472
    %v94 = vsub.f32 %v93, 1.3862944
    %v95 = vadd.f32 %v94, %v81
    %s96 = smul.u32 0, 128
    %v97 = vlaneseq
    %v98 = vand.u32 %v97, 127
    %v99 = vstv %s96
    %v100 = vadd.s32 %v99, %v98
    %vm101 = vcmp.lt.s32.totalorder %v100, 8
    %v102 = vsel %vm101, %v95, 0.0
    %vm103 = vcmask 1040384
    %v104 = vsel %vm103, %v102, 0.0
    %105 = vadd.xlane.f32.xlu0 %v104
    %v106 = vpop.xlane.xlu0 %105
    %v107 = vrot.slane %v106, 4
    %v108 = vadd.f32 %v106, %v107
    %v109 = vrot.slane %v108, 2
    %v110 = vadd.f32 %v108, %v109
    %v111 = vrot.slane %v110, 1
    %v112 = vadd.f32 %v110, %v111
    %s113 = vtos %v112
    %v114 = vstv %s113
    %vm115 = vcmask 0
    %116 = vst.msk [vmem:[#allocation5] sm:$0x1] %vm115, %v114
    // Predicated region
    $region14: #{tpu_custom_call.1} parent=1 // pred_check
      _
    $region15: #{tpu_custom_call.1} parent=1 // pred_check_branch
      %118 = sbr.rel (0) target = $region17
    $region16: #{tpu_custom_call.1} parent=1 // pred_region
      %s120 = ssub.s32 16, 16
      %121 = vsyncadd [#allocation4], %s120
      %s123 = sshll.u32 [#allocation5], 4
      %s124 = int_to_ptr.vmem [resolvable:$true] %s123
      %126 = dma.vmem_to_hbm [thread:$0]  %s124, 16, %s2, [#allocation4]
    $region17: #{tpu_custom_call.1} parent=1 // pred_fallthru
      _
    // Predicated region
    $region18: #{tpu_custom_call.1} parent=1 // pred_check
      _
    $region19: #{tpu_custom_call.1} parent=1 // pred_check_branch
      %128 = sbr.rel (0) target = $region21
    $region20: #{tpu_custom_call.1} parent=1 // pred_region
      %129 = dma.done [#allocation4], 16
    $region21: #{tpu_custom_call.1} parent=1 // pred_fallthru
      _
    %130 = vsyncpa [#allocation3], 1
    %131 = vsyncpa [#allocation4], 1

</llo_original>
